<compile_context>
chip_gen: v7x
topology: tpu7x:2x2x1
jax: 0.10.0
libtpu: 0.0.40
codegen_flags: <defaults>
</compile_context>

<pallas_src>
import functools

import jax
import jax.numpy as jnp
import numpy as np
from jax.experimental import pallas as pl
from jax.experimental.pallas import tpu as pltpu


# ---------------------------------------------------------------------------
# Kernels
# ---------------------------------------------------------------------------
def _matmul_kernel(x_ref, w_ref, o_ref, acc_ref):
    """K-tiled matmul with f32 accumulator carried across the K grid axis."""
    k = pl.program_id(2)

    @pl.when(k == 0)
    def _():
        acc_ref[...] = jnp.zeros_like(acc_ref)

    acc_ref[...] += jnp.dot(
        x_ref[...], w_ref[...], preferred_element_type=jnp.float32
    )

    @pl.when(k == pl.num_programs(2) - 1)
    def _():
        o_ref[...] = acc_ref[...].astype(o_ref.dtype)


def _matmul_bias_kernel(x_ref, w_ref, b_ref, o_ref, acc_ref):
    """Same as above; bias folded in once on the last K step (in f32)."""
    k = pl.program_id(2)

    @pl.when(k == 0)
    def _():
        acc_ref[...] = jnp.zeros_like(acc_ref)

    acc_ref[...] += jnp.dot(
        x_ref[...], w_ref[...], preferred_element_type=jnp.float32
    )

    @pl.when(k == pl.num_programs(2) - 1)
    def _():
        o_ref[...] = (acc_ref[...] + b_ref[...].astype(jnp.float32)).astype(
            o_ref.dtype
        )


def _matmul_single_k_kernel(x_ref, w_ref, o_ref):
    """K fits in one tile: no scratch, no pl.when — straight MXU -> store."""
    o_ref[...] = jnp.dot(
        x_ref[...], w_ref[...], preferred_element_type=jnp.float32
    ).astype(o_ref.dtype)


def _matmul_bias_single_k_kernel(x_ref, w_ref, b_ref, o_ref):
    acc = jnp.dot(x_ref[...], w_ref[...], preferred_element_type=jnp.float32)
    o_ref[...] = (acc + b_ref[...].astype(jnp.float32)).astype(o_ref.dtype)


# ---------------------------------------------------------------------------
# Wrapper
# ---------------------------------------------------------------------------
def _round_up(x, m):
    return ((x + m - 1) // m) * m


@functools.partial(jax.jit, static_argnames=("tm_pref", "tn_pref", "tk_pref"))
def matmul_pallas(x, matrix, bias=None, *, tm_pref=256, tn_pref=256, tk_pref=512):
    """Equivalent of MatMul.forward: x @ matrix (+ bias), last-dim contraction."""
    orig_shape = x.shape
    k_dim = orig_shape[-1]
    n_dim = matrix.shape[-1]
    m_dim = int(np.prod(orig_shape[:-1]))
    x2d = x.reshape(m_dim, k_dim)

    # Tile sizes: lane-dense output (tn multiple of 128), sublane-aligned tm
    # (multiple of 8), K tiles multiples of 128. Clamp to the (padded)
    # problem size so small shapes don't over-allocate VMEM.
    tm = min(tm_pref, _round_up(m_dim, 8))
    tn = min(tn_pref, _round_up(n_dim, 128))
    tk = min(tk_pref, _round_up(k_dim, 128))

    m_pad = _round_up(m_dim, tm)
    k_pad = _round_up(k_dim, tk)
    n_pad = _round_up(n_dim, tn)

    if (m_pad, k_pad) != (m_dim, k_dim):
        x2d = jnp.pad(x2d, ((0, m_pad - m_dim), (0, k_pad - k_dim)))
    w = matrix
    if (k_pad, n_pad) != (k_dim, n_dim):
        w = jnp.pad(w, ((0, k_pad - k_dim), (0, n_pad - n_dim)))

    grid_m, grid_n, grid_k = m_pad // tm, n_pad // tn, k_pad // tk

    in_bytes = jnp.dtype(x.dtype).itemsize
    out_bytes = jnp.dtype(x.dtype).itemsize
    # Rough VMEM budget: double-buffered input tiles + f32 acc + output + bias.
    vmem_needed = (
        2 * (tm * tk + tk * tn) * in_bytes
        + tm * tn * 4
        + 2 * tm * tn * out_bytes
        + 2 * tn * in_bytes
    )
    vmem_limit = int(min(64 * 1024 * 1024, max(32 * 1024 * 1024, 2 * vmem_needed)))

    cost = pl.CostEstimate(
        flops=2 * m_pad * n_pad * k_pad,
        transcendentals=0,
        bytes_accessed=(
            m_pad * k_pad * in_bytes
            + k_pad * n_pad * in_bytes
            + m_pad * n_pad * out_bytes
        ),
    )
    out_shape = jax.ShapeDtypeStruct((m_pad, n_pad), x.dtype)

    have_bias = bias is not None
    if have_bias:
        b2d = bias.reshape(1, n_dim)
        if n_pad != n_dim:
            b2d = jnp.pad(b2d, ((0, 0), (0, n_pad - n_dim)))

    if grid_k == 1:
        # ---- single-K-tile fast path: 2-D grid, no scratch accumulator ----
        grid = (grid_m, grid_n)
        x_spec = pl.BlockSpec((tm, tk), lambda i, j: (i, 0))
        w_spec = pl.BlockSpec((tk, tn), lambda i, j: (0, j))
        o_spec = pl.BlockSpec((tm, tn), lambda i, j: (i, j))
        compiler_params = pltpu.CompilerParams(
            dimension_semantics=("parallel", "parallel"),
            vmem_limit_bytes=vmem_limit,
        )
        if have_bias:
            b_spec = pl.BlockSpec((1, tn), lambda i, j: (0, j))
            out = pl.pallas_call(
                _matmul_bias_single_k_kernel,
                out_shape=out_shape,
                grid_spec=pltpu.PrefetchScalarGridSpec(
                    num_scalar_prefetch=0,
                    grid=grid,
                    in_specs=[x_spec, w_spec, b_spec],
                    out_specs=o_spec,
                ),
                compiler_params=compiler_params,
                cost_estimate=cost,
            )(x2d, w, b2d)
        else:
            out = pl.pallas_call(
                _matmul_single_k_kernel,
                out_shape=out_shape,
                grid_spec=pltpu.PrefetchScalarGridSpec(
                    num_scalar_prefetch=0,
                    grid=grid,
                    in_specs=[x_spec, w_spec],
                    out_specs=o_spec,
                ),
                compiler_params=compiler_params,
                cost_estimate=cost,
            )(x2d, w)
    else:
        # ---- general K-tiled path with f32 scratch accumulator ------------
        grid = (grid_m, grid_n, grid_k)
        x_spec = pl.BlockSpec((tm, tk), lambda i, j, k: (i, k))
        w_spec = pl.BlockSpec((tk, tn), lambda i, j, k: (k, j))
        o_spec = pl.BlockSpec((tm, tn), lambda i, j, k: (i, j))
        scratch = [pltpu.VMEM((tm, tn), jnp.float32)]
        compiler_params = pltpu.CompilerParams(
            dimension_semantics=("parallel", "parallel", "arbitrary"),
            vmem_limit_bytes=vmem_limit,
        )
        if have_bias:
            b_spec = pl.BlockSpec((1, tn), lambda i, j, k: (0, j))
            out = pl.pallas_call(
                _matmul_bias_kernel,
                out_shape=out_shape,
                grid_spec=pltpu.PrefetchScalarGridSpec(
                    num_scalar_prefetch=0,
                    grid=grid,
                    in_specs=[x_spec, w_spec, b_spec],
                    out_specs=o_spec,
                    scratch_shapes=scratch,
                ),
                compiler_params=compiler_params,
                cost_estimate=cost,
            )(x2d, w, b2d)
        else:
            out = pl.pallas_call(
                _matmul_kernel,
                out_shape=out_shape,
                grid_spec=pltpu.PrefetchScalarGridSpec(
                    num_scalar_prefetch=0,
                    grid=grid,
                    in_specs=[x_spec, w_spec],
                    out_specs=o_spec,
                    scratch_shapes=scratch,
                ),
                compiler_params=compiler_params,
                cost_estimate=cost,
            )(x2d, w)

    out = out[:m_dim, :n_dim]
    return out.reshape(*orig_shape[:-1], n_dim)


def init_matmul_params(key, in_channels, out_channels, use_bias=True):
    """Xavier-normal `matrix`, zeros `bias` (matches the PyTorch module init)."""
    std = float(np.sqrt(2.0 / (in_channels + out_channels)))
    matrix = jax.random.normal(key, (in_channels, out_channels), jnp.float32) * std
    bias = jnp.zeros((1, 1, out_channels), jnp.float32) if use_bias else None
    return matrix, bias


if __name__ == "__main__":
    batch, seq, in_channels, out_channels = 2, 8, 32, 32
    use_bias = True

    key = jax.random.PRNGKey(0)
    kx, kw = jax.random.split(key)

    x = jax.random.normal(kx, (batch, seq, in_channels), jnp.float32)
    matrix, bias = init_matmul_params(kw, in_channels, out_channels, use_bias)

    out = matmul_pallas(x, matrix, bias if use_bias else None)
    out = jax.block_until_ready(out)

    # Reference check against plain JAX.
    ref = jnp.matmul(x, matrix)
    if use_bias:
        ref = ref + bias
    np.testing.assert_allclose(np.asarray(out), np.asarray(ref), rtol=1e-5, atol=1e-5)
    assert out.shape == (batch, seq, out_channels)

    # Also exercise the no-bias path once.
    out_nb = jax.block_until_ready(matmul_pallas(x, matrix, None))
    np.testing.assert_allclose(
        np.asarray(out_nb), np.asarray(jnp.matmul(x, matrix)), rtol=1e-5, atol=1e-5
    )

    # Exercise the multi-K-tile accumulator path (forces grid_k > 1).
    k_big, n_big, m_big = 384, 256, 64
    kx2, kw2 = jax.random.split(kw)
    x_big = jax.random.normal(kx2, (m_big, k_big), jnp.float32)
    w_big = jax.random.normal(kw2, (k_big, n_big), jnp.float32) * 0.05
    out_big = jax.block_until_ready(
        matmul_pallas(x_big, w_big, None, tk_pref=128, tm_pref=64, tn_pref=128)
    )
    np.testing.assert_allclose(
        np.asarray(out_big), np.asarray(x_big @ w_big), rtol=1e-4, atol=1e-4
    )

    print("KERNEL_OK")
</pallas_src>

<mosaic_0001>
module attributes {stable_mosaic.version = 11 : i64} {
  func.func @_matmul_bias_single_k_kernel(%arg0: i32, %arg1: i32, %arg2: memref<16x128xf32, #tpu.memory_space<vmem>>, %arg3: memref<128x128xf32, #tpu.memory_space<vmem>>, %arg4: memref<1x128xf32, #tpu.memory_space<vmem>>, %arg5: memref<16x128xf32, #tpu.memory_space<vmem>>) attributes {dimension_semantics = [#tpu.dimension_semantics<parallel>, #tpu.dimension_semantics<parallel>], iteration_bounds = array<i64: 1, 1>, scalar_prefetch = 0 : i64, scratch_operands = 0 : i64, tpu.core_type = #tpu.core_type<tc>, window_params = [{transform_indices = @transform_0, window_bounds = array<i64: 16, 128>}, {transform_indices = @transform_1, window_bounds = array<i64: 128, 128>}, {transform_indices = @transform_2, window_bounds = array<i64: 1, 128>}, {transform_indices = @transform_3, window_bounds = array<i64: 16, 128>}]} {
    %c0 = arith.constant 0 : index
    %c0_0 = arith.constant 0 : index
    %0 = vector.load %arg2[%c0, %c0_0] : memref<16x128xf32, #tpu.memory_space<vmem>>, vector<16x128xf32>
    %c0_1 = arith.constant 0 : index
    %c0_2 = arith.constant 0 : index
    %1 = vector.load %arg3[%c0_1, %c0_2] : memref<128x128xf32, #tpu.memory_space<vmem>>, vector<128x128xf32>
    %cst = arith.constant dense<0.000000e+00> : vector<16x128xf32>
    %2 = tpu.matmul %0, %1, %cst {dimension_numbers = #tpu.dot_dimension_numbers<[1], [0], [0], [1], [0, 0, 1, 1], [], []>} : vector<16x128xf32>, vector<128x128xf32>, vector<16x128xf32> -> vector<16x128xf32>
    %c0_3 = arith.constant 0 : index
    %c0_4 = arith.constant 0 : index
    %3 = vector.load %arg4[%c0_3, %c0_4] : memref<1x128xf32, #tpu.memory_space<vmem>>, vector<1x128xf32>
    %4 = vector.broadcast %3 : vector<1x128xf32> to vector<16x128xf32>
    %5 = arith.addf %2, %4 : vector<16x128xf32>
    %c0_5 = arith.constant 0 : index
    %c0_6 = arith.constant 0 : index
    %6 = vector.load %arg5[%c0_5, %c0_6] : memref<16x128xf32, #tpu.memory_space<vmem>>, vector<16x128xf32>
    tpu.vector_store %arg5[%c0_5, %c0_6], %5 {strides = array<i32>} : memref<16x128xf32, #tpu.memory_space<vmem>>, vector<16x128xf32>,
    return
  }
  func.func @transform_0(%arg0: i32, %arg1: i32) -> (i32, i32) {
    %c0_i32 = arith.constant 0 : i32
    %c0_i32_0 = arith.constant 0 : i32
    return %arg0, %c0_i32 : i32, i32
  }
  func.func @transform_1(%arg0: i32, %arg1: i32) -> (i32, i32) {
    %c0_i32 = arith.constant 0 : i32
    %c0_i32_0 = arith.constant 0 : i32
    return %c0_i32, %arg1 : i32, i32
  }
  func.func @transform_2(%arg0: i32, %arg1: i32) -> (i32, i32) {
    %c0_i32 = arith.constant 0 : i32
    %c0_i32_0 = arith.constant 0 : i32
    return %c0_i32, %arg1 : i32, i32
  }
  func.func @transform_3(%arg0: i32, %arg1: i32) -> (i32, i32) {
    %c0_i32 = arith.constant 0 : i32
    return %arg0, %arg1 : i32, i32
  }
}

</mosaic_0001>

<llo_original>
// kernel: matmul_pallas.1
$region0: #{matmul_pallas.1}
  #allocation0 [shape = 'u32[]', space=smem, size = 0x4, offset = 0x4, fixed_abs, tag = 'smem constant byte address 0x4 - core index']
  #allocation1 [shape = 'u32[144,128]{1,0:T(1,128)}', space=vmem, size = 0x12000, scoped, tag = 'internal scratch']
  %s0 = inlined_call_operand.vmem [shape: f32[16,128], index: 0, kind: input, shape index: {}]
  %s1 = inlined_call_operand.vmem [shape: f32[128,128], index: 1, kind: input, shape index: {}]
  %s2 = inlined_call_operand.vmem [shape: f32[1,128], index: 2, kind: input, shape index: {}]
  %s3 = inlined_call_operand.vmem [shape: f32[16,128], index: 3, kind: output, shape index: {}]
  %s4 = sld [smem:[#allocation0]]
  $region22: #{matmul_pallas.1} parent=0
    _
  %s6 = ssub.s32 1, %s4
  %s7 = scalar_select 0, %s6, %s4
  // Predicated region
  $region2: #{matmul_pallas.1} parent=0 // pred_check
    _
  $region3: #{matmul_pallas.1} parent=0 // pred_check_branch
    %9 = sbr.rel (0) target = $region5
  $region4: #{matmul_pallas.1} parent=0 // pred_region
    _
  $region5: #{matmul_pallas.1} parent=0 // pred_fallthru
    _
  // Predicated region
  $region6: #{matmul_pallas.1} parent=0 // pred_check
    _
  $region7: #{matmul_pallas.1} parent=0 // pred_check_branch
    %11 = sbr.rel (0) target = $region9
  $region8: #{matmul_pallas.1} parent=0 // pred_region
    _
  $region9: #{matmul_pallas.1} parent=0 // pred_fallthru
    _
  // Predicated region
  $region10: #{matmul_pallas.1} parent=0 // pred_check
    _
  $region11: #{matmul_pallas.1} parent=0 // pred_check_branch
    %13 = sbr.rel (0) target = $region13
  $region12: #{matmul_pallas.1} parent=0 // pred_region
    _
  $region13: #{matmul_pallas.1} parent=0 // pred_fallthru
    _
  %v14 = vld [vmem:[%s0] sm:$0xff]
  %v15 = vld [vmem:[%s0 + $0x8] sm:$0xff]
  %v16 = vld [vmem:[%s1] sm:$0xff]
  %v17 = vld [vmem:[%s1 + $0x8] sm:$0xff]
  %v18 = vld [vmem:[%s1 + $0x10] sm:$0xff]
  %v19 = vld [vmem:[%s1 + $0x18] sm:$0xff]
  %v20 = vld [vmem:[%s1 + $0x20] sm:$0xff]
  %v21 = vld [vmem:[%s1 + $0x28] sm:$0xff]
  %v22 = vld [vmem:[%s1 + $0x30] sm:$0xff]
  %v23 = vld [vmem:[%s1 + $0x38] sm:$0xff]
  %v24 = vld [vmem:[%s1 + $0x40] sm:$0xff]
  %v25 = vld [vmem:[%s1 + $0x48] sm:$0xff]
  %v26 = vld [vmem:[%s1 + $0x50] sm:$0xff]
  %v27 = vld [vmem:[%s1 + $0x58] sm:$0xff]
  %v28 = vld [vmem:[%s1 + $0x60] sm:$0xff]
  %v29 = vld [vmem:[%s1 + $0x68] sm:$0xff]
  %v30 = vld [vmem:[%s1 + $0x70] sm:$0xff]
  %v31 = vld [vmem:[%s1 + $0x78] sm:$0xff]
  %v32 = vld [vmem:[%s2] sm:$0x1]
  %v34 = vlaneseq
  %v35 = vshrl.u32 %v34, 7
  %v36 = vsub.s32 0, %v35
  %v37 = vrot.slane %v32, %v36
  %39 = vmatprep.subr.mxu0 0.0
  %40 = vmatpush1.msra.mxu0 %v16
  %41 = vmatprep.subr.mxu0 0.0
  %42 = vmatpush1.msra.mxu0 %v17
  %43 = vmatprep.subr.mxu0 0.0
  %44 = vmatpush1.msra.mxu0 %v18
  %45 = vmatprep.subr.mxu0 0.0
  %46 = vmatpush1.msra.mxu0 %v19
  %47 = vmatprep.subr.mxu0 0.0
  %48 = vmatpush1.msra.mxu0 %v20
  %49 = vmatprep.subr.mxu0 0.0
  %50 = vmatpush1.msra.mxu0 %v21
  %51 = vmatprep.subr.mxu0 0.0
  %52 = vmatpush1.msra.mxu0 %v22
  %53 = vmatprep.subr.mxu0 0.0
  %54 = vmatpush1.msra.mxu0 %v23
  %55 = vmatprep.subr.mxu0 0.0
  %56 = vmatpush1.msra.mxu0 %v24
  %57 = vmatprep.subr.mxu0 0.0
  %58 = vmatpush1.msra.mxu0 %v25
  %59 = vmatprep.subr.mxu0 0.0
  %60 = vmatpush1.msra.mxu0 %v26
  %61 = vmatprep.subr.mxu0 0.0
  %62 = vmatpush1.msra.mxu0 %v27
  %63 = vmatprep.subr.mxu0 0.0
  %64 = vmatpush1.msra.mxu0 %v28
  %65 = vmatprep.subr.mxu0 0.0
  %66 = vmatpush1.msra.mxu0 %v29
  %67 = vmatprep.subr.mxu0 0.0
  %68 = vmatpush1.msra.mxu0 %v30
  %69 = vmatprep.subr.mxu0 0.0
  %70 = vmatpush1.msra.mxu0 %v31
  %71 = vmatprep.subr.mxu0 0.0
  %72 = vmatpush1.msra.mxu0 0.0
  %73 = vmatprep.subr.mxu0 0.0
  %74 = vmatpush1.msra.mxu0 0.0
  %75 = vmatprep.subr.mxu0 0.0
  %76 = vmatpush1.msra.mxu0 0.0
  %77 = vmatprep.subr.mxu0 0.0
  %78 = vmatpush1.msra.mxu0 0.0
  %79 = vmatprep.subr.mxu0 0.0
  %80 = vmatpush1.msra.mxu0 0.0
  %81 = vmatprep.subr.mxu0 0.0
  %82 = vmatpush1.msra.mxu0 0.0
  %83 = vmatprep.subr.mxu0 0.0
  %84 = vmatpush1.msra.mxu0 0.0
  %85 = vmatprep.subr.mxu0 0.0
  %86 = vmatpush1.msra.mxu0 0.0
  %87 = vmatprep.subr.mxu0 0.0
  %88 = vmatpush1.msra.mxu0 0.0
  %89 = vmatprep.subr.mxu0 0.0
  %90 = vmatpush1.msra.mxu0 0.0
  %91 = vmatprep.subr.mxu0 0.0
  %92 = vmatpush1.msra.mxu0 0.0
  %93 = vmatprep.subr.mxu0 0.0
  %94 = vmatpush1.msra.mxu0 0.0
  %95 = vmatprep.subr.mxu0 0.0
  %96 = vmatpush1.msra.mxu0 0.0
  %97 = vmatprep.subr.mxu0 0.0
  %98 = vmatpush1.msra.mxu0 0.0
  %99 = vmatprep.subr.mxu0 0.0
  %100 = vmatpush1.msra.mxu0 0.0
  %101 = vmatprep.subr.mxu0 0.0
  %102 = vmatpush1.msra.mxu0 0.0
  %103 = vmatprep.mubr.f32.mxu0 0.0
  %104 = vmatmul.mubr.f32.gmra.mrb[0].mxu0 %v14
  %v105 = vpop.f32.mrb[0].mxu0
  %v106 = vadd.f32 %v37, %v105
  %v107 = vpop.f32.mrb[0].mxu0
  %108 = vmatprep.mubr.f32.mxu0 0.0
  %109 = vmatmul.mubr.f32.gmra.mrb[0].mxu0 %v15
  %v110 = vpop.f32.mrb[0].mxu0
  %v111 = vadd.f32 %v37, %v110
  %v112 = vpop.f32.mrb[0].mxu0
  %113 = vdwg.mxu0
  %114 = vst [vmem:[%s3] sm:$0xff] %v106
  %115 = vst [vmem:[%s3 + $0x8] sm:$0xff] %v111
  // Predicated region
  $region14: #{matmul_pallas.1} parent=0 // pred_check
    _
  $region15: #{matmul_pallas.1} parent=0 // pred_check_branch
    %117 = sbr.rel (0) target = $region17
  $region16: #{matmul_pallas.1} parent=0 // pred_region
    _
  $region17: #{matmul_pallas.1} parent=0 // pred_fallthru
    _
  // Predicated region
  $region18: #{matmul_pallas.1} parent=0 // pred_check
    _
  $region19: #{matmul_pallas.1} parent=0 // pred_check_branch
    %119 = sbr.rel (0) target = $region21
  $region20: #{matmul_pallas.1} parent=0 // pred_region
    _
  $region21: #{matmul_pallas.1} parent=0 // pred_fallthru
    _

</llo_original>
